<compile_context>
chip_gen: v6e
topology: v6e:2x2x1
jax: 0.10.0
libtpu: 0.0.40
codegen_flags: <defaults>
</compile_context>

<pallas_src>
import functools

import jax
import jax.numpy as jnp
import numpy as np
from jax.experimental import pallas as pl
from jax.experimental.pallas import tpu as pltpu


def _round_up(x, m):
    return ((x + m - 1) // m) * m


def _gc_kernel(x_ref, adj_ref, w_ref, b_ref, out_ref, h_ref, acc_ref, *,
               tk, bt, shared_adj):
    """One grid step = (batch tile b, output row tile m, adj column tile k).

    x_ref:   (Bt, N_p, F_in_p)   resident for the whole batch tile
    adj_ref: (Bt, TM, TK)  or (TM, TK) when the adjacency is shared
    w_ref:   (F_in_p, F_out_p)   pre-transposed nn.Linear weight
    b_ref:   (1, F_out_p)        float32 bias
    out_ref: (Bt, TM, F_out_p)
    h_ref:   (Bt, N_p, F_out_p)  VMEM scratch holding x @ W + b (compute dtype)
    acc_ref: (Bt, TM, F_out_p)   float32 VMEM accumulator for adj @ h
    """
    m = pl.program_id(1)
    k = pl.program_id(2)
    k_last = pl.num_programs(2) - 1

    col = pl.multiple_of(k * tk, tk)

    # Linear: computed once per batch tile, spread over the first row tile's
    # k loop, then cached in VMEM for all remaining row tiles.
    @pl.when(m == 0)
    def _compute_h_tile():
        w = w_ref[...]
        bias = b_ref[...]
        for i in range(bt):
            xk = x_ref[i, pl.ds(col, tk), :]
            hk = jnp.dot(xk, w, preferred_element_type=jnp.float32) + bias
            h_ref[i, pl.ds(col, tk), :] = hk.astype(h_ref.dtype)

    @pl.when(k == 0)
    def _init_acc():
        acc_ref[...] = jnp.zeros_like(acc_ref)

    # Graph aggregation: adj @ h, accumulated in f32 over the column tiles.
    for i in range(bt):
        a = adj_ref[...] if shared_adj else adj_ref[i]
        hk = h_ref[i, pl.ds(col, tk), :]
        acc_ref[i] += jnp.dot(a, hk, preferred_element_type=jnp.float32)

    @pl.when(k == k_last)
    def _store():
        out_ref[...] = acc_ref[...].astype(out_ref.dtype)


def graph_convolution(x, adj_matrix, weight, bias, *,
                      compute_dtype=jnp.bfloat16, tile=512):
    """y = adj_matrix @ (x @ weight.T + bias).

    x:          (B, N, F_in) or (N, F_in)
    adj_matrix: (B, N, N)    or (N, N)   (2-D = shared across the batch)
    weight:     (F_out, F_in)            (PyTorch nn.Linear layout)
    bias:       (F_out,)
    """
    squeeze = x.ndim == 2
    if squeeze:
        x = x[None]
    B, N, F_in = x.shape
    F_out = weight.shape[0]
    out_dtype = x.dtype
    shared_adj = adj_matrix.ndim == 2

    # Padded sizes: lane dims to multiples of 128, N to a multiple of the tile.
    f_in_p = _round_up(F_in, 128)
    f_out_p = _round_up(F_out, 128)
    n_p = _round_up(N, 128)
    if n_p <= tile:
        tm = tk = n_p
    else:
        n_p = _round_up(N, tile)
        tm = tk = tile

    # Batch elements per grid step (amortizes per-step overhead on small graphs).
    if n_p > 512:
        bt = 1
    else:
        bt = 1
        for cand in range(min(B, 8), 0, -1):
            if B % cand == 0 and cand * n_p <= 2048:
                bt = cand
                break
    bg = B // bt

    # Zero-pad operands (zero adj columns / weight columns keep padding inert).
    x_p = jnp.zeros((B, n_p, f_in_p), compute_dtype).at[:, :N, :F_in].set(
        x.astype(compute_dtype))
    w_p = jnp.zeros((f_in_p, f_out_p), compute_dtype).at[:F_in, :F_out].set(
        weight.T.astype(compute_dtype))
    b_p = jnp.zeros((1, f_out_p), jnp.float32).at[0, :F_out].set(
        bias.astype(jnp.float32))
    if shared_adj:
        adj_p = jnp.zeros((n_p, n_p), compute_dtype).at[:N, :N].set(
            adj_matrix.astype(compute_dtype))
        adj_spec = pl.BlockSpec((tm, tk), lambda b, m, k: (m, k))
    else:
        adj_p = jnp.zeros((B, n_p, n_p), compute_dtype).at[:, :N, :N].set(
            adj_matrix.astype(compute_dtype))
        adj_spec = pl.BlockSpec((bt, tm, tk), lambda b, m, k: (b, m, k))

    grid = (bg, n_p // tm, n_p // tk)

    kernel = functools.partial(_gc_kernel, tk=tk, bt=bt, shared_adj=shared_adj)

    # Rough VMEM budget (double-buffered streamed operands + scratch) with
    # headroom; capped below v7x's 64 MiB physical VMEM.
    cd = jnp.dtype(compute_dtype).itemsize
    od = jnp.dtype(out_dtype).itemsize
    adj_blk = (bt if not shared_adj else 1) * tm * tk * cd
    est = (2 * bt * n_p * f_in_p * cd        # x (resident, budgeted 2x)
           + 2 * adj_blk                     # adj tiles, double-buffered
           + 2 * bt * tm * f_out_p * od      # out tiles, double-buffered
           + f_in_p * f_out_p * cd + f_out_p * 4
           + bt * n_p * f_out_p * cd         # h scratch
           + bt * tm * f_out_p * 4)          # acc scratch
    vmem_limit = int(min(max(2 * est, 32 * 1024 * 1024), 56 * 1024 * 1024))

    out = pl.pallas_call(
        kernel,
        out_shape=jax.ShapeDtypeStruct((B, n_p, f_out_p), out_dtype),
        grid=grid,
        in_specs=[
            pl.BlockSpec((bt, n_p, f_in_p), lambda b, m, k: (b, 0, 0)),
            adj_spec,
            pl.BlockSpec((f_in_p, f_out_p), lambda b, m, k: (0, 0)),
            pl.BlockSpec((1, f_out_p), lambda b, m, k: (0, 0)),
        ],
        out_specs=pl.BlockSpec((bt, tm, f_out_p), lambda b, m, k: (b, m, 0)),
        scratch_shapes=[
            pltpu.VMEM((bt, n_p, f_out_p), compute_dtype),  # h = x @ W + b
            pltpu.VMEM((bt, tm, f_out_p), jnp.float32),     # adj @ h accumulator
        ],
        compiler_params=pltpu.CompilerParams(
            # Row-tile axis reuses the per-batch h scratch computed at m == 0,
            # so it must stay "arbitrary" (not sharded across TensorCores).
            dimension_semantics=("parallel", "arbitrary", "arbitrary"),
            vmem_limit_bytes=vmem_limit),
    )(x_p, adj_p, w_p, b_p)

    out = out[:, :N, :F_out]
    return out[0] if squeeze else out


def reference(x, adj_matrix, weight, bias):
    """Pure-JAX reference of the torch forward."""
    h = jnp.einsum("...nf,of->...no", x, weight) + bias
    return jnp.matmul(adj_matrix, h)


def init_params(key, in_features, out_features):
    """Mimic PyTorch nn.Linear default init: uniform(-1/sqrt(in), 1/sqrt(in))."""
    bound = 1.0 / np.sqrt(in_features)
    k1, k2 = jax.random.split(key)
    weight = jax.random.uniform(
        k1, (out_features, in_features), jnp.float32, -bound, bound)
    bias = jax.random.uniform(
        k2, (out_features,), jnp.float32, -bound, bound)
    return weight, bias


if __name__ == "__main__":
    B, N, F_IN, F_OUT = 2, 16, 32, 8

    key = jax.random.PRNGKey(0)
    kx, ka, kp, kx2, ka2, kp2 = jax.random.split(key, 6)

    x = jax.random.normal(kx, (B, N, F_IN), jnp.float32)
    adj = jax.random.uniform(ka, (B, N, N), jnp.float32)
    adj = adj / jnp.sum(adj, axis=-1, keepdims=True)
    weight, bias = init_params(kp, F_IN, F_OUT)

    # 1) f32 compute, per-batch adjacency (tight numerical check).
    out = graph_convolution(x, adj, weight, bias, compute_dtype=jnp.float32)
    out = jax.block_until_ready(out)
    ref = reference(x, adj, weight, bias)
    np.testing.assert_allclose(np.asarray(out), np.asarray(ref),
                               rtol=1e-5, atol=1e-5)
    assert out.shape == (B, N, F_OUT)

    # 2) bf16 streamed operands (f32 accumulation), shared 2-D adjacency
    #    (exercises the non-broadcast adjacency path).
    adj_shared = adj[0]
    out2 = graph_convolution(x, adj_shared, weight, bias,
                             compute_dtype=jnp.bfloat16)
    out2 = jax.block_until_ready(out2)
    ref2 = reference(x, adj_shared, weight, bias)
    np.testing.assert_allclose(np.asarray(out2), np.asarray(ref2),
                               rtol=5e-2, atol=5e-2)

    # 3) multi-tile path (N > tile) exercising the (m, k) accumulation loops.
    N2, F_IN2, F_OUT2 = 300, 48, 24
    x2 = jax.random.normal(kx2, (B, N2, F_IN2), jnp.float32)
    adj2 = jax.random.uniform(ka2, (B, N2, N2), jnp.float32)
    adj2 = adj2 / jnp.sum(adj2, axis=-1, keepdims=True)
    w2, b2 = init_params(kp2, F_IN2, F_OUT2)
    out3 = graph_convolution(x2, adj2, w2, b2,
                             compute_dtype=jnp.float32, tile=128)
    out3 = jax.block_until_ready(out3)
    ref3 = reference(x2, adj2, w2, b2)
    np.testing.assert_allclose(np.asarray(out3), np.asarray(ref3),
                               rtol=1e-4, atol=1e-5)

    print("KERNEL_OK")
</pallas_src>

<mosaic_0001>
module attributes {stable_mosaic.version = 11 : i64} {
  func.func @_gc_kernel(%arg0: i32, %arg1: i32, %arg2: i32, %arg3: memref<2x128x128xf32, #tpu.memory_space<vmem>>, %arg4: memref<2x128x128xf32, #tpu.memory_space<vmem>>, %arg5: memref<128x128xf32, #tpu.memory_space<vmem>>, %arg6: memref<1x128xf32, #tpu.memory_space<vmem>>, %arg7: memref<2x128x128xf32, #tpu.memory_space<vmem>>, %arg8: memref<2x128x128xf32, #tpu.memory_space<vmem>>, %arg9: memref<2x128x128xf32, #tpu.memory_space<vmem>>) attributes {dimension_semantics = [#tpu.dimension_semantics<parallel>, #tpu.dimension_semantics<arbitrary>, #tpu.dimension_semantics<arbitrary>], iteration_bounds = array<i64: 1, 1, 1>, scalar_prefetch = 0 : i64, scratch_operands = 2 : i64, tpu.core_type = #tpu.core_type<tc>, window_params = [{transform_indices = @transform_0, window_bounds = array<i64: 2, 128, 128>}, {transform_indices = @transform_1, window_bounds = array<i64: 2, 128, 128>}, {pipeline_mode = #tpu.pipeline_mode<synchronous>, transform_indices = @transform_2, window_bounds = array<i64: 128, 128>}, {pipeline_mode = #tpu.pipeline_mode<synchronous>, transform_indices = @transform_3, window_bounds = array<i64: 1, 128>}, {transform_indices = @transform_4, window_bounds = array<i64: 2, 128, 128>}]} {
    %c128_i32 = arith.constant 128 : i32
    %0 = arith.muli %arg2, %c128_i32 : i32
    %1 = tpu.assume_multiple %0, 128 : i32
    %c0_i32 = arith.constant 0 : i32
    %2 = arith.cmpi eq, %arg1, %c0_i32 : i32
    %3 = arith.extui %2 : i1 to i32
    %c0_i32_0 = arith.constant 0 : i32
    %4 = arith.cmpi ne, %3, %c0_i32_0 : i32
    scf.if %4 {
      %c0_26 = arith.constant 0 : index
      %c0_27 = arith.constant 0 : index
      %35 = vector.load %arg5[%c0_26, %c0_27] : memref<128x128xf32, #tpu.memory_space<vmem>>, vector<128x128xf32>
      %c0_28 = arith.constant 0 : index
      %c0_29 = arith.constant 0 : index
      %36 = vector.load %arg6[%c0_28, %c0_29] : memref<1x128xf32, #tpu.memory_space<vmem>>, vector<1x128xf32>
      %c0_30 = arith.constant 0 : index
      %37 = arith.index_cast %1 : i32 to index
      %c0_31 = arith.constant 0 : index
      %38 = vector.load %arg3[%c0_30, %37, %c0_31] : memref<2x128x128xf32, #tpu.memory_space<vmem>>, vector<1x128x128xf32>
      %39 = vector.shape_cast %38 : vector<1x128x128xf32> to vector<128x128xf32>
      %cst_32 = arith.constant dense<0.000000e+00> : vector<128x128xf32>
      %40 = tpu.matmul %39, %35, %cst_32 {dimension_numbers = #tpu.dot_dimension_numbers<[1], [0], [0], [1], [0, 0, 1, 1], [], []>} : vector<128x128xf32>, vector<128x128xf32>, vector<128x128xf32> -> vector<128x128xf32>
      %41 = vector.broadcast %36 : vector<1x128xf32> to vector<128x128xf32>
      %42 = arith.addf %40, %41 : vector<128x128xf32>
      %c0_33 = arith.constant 0 : index
      %43 = arith.index_cast %1 : i32 to index
      %c0_34 = arith.constant 0 : index
      %44 = vector.load %arg8[%c0_33, %43, %c0_34] : memref<2x128x128xf32, #tpu.memory_space<vmem>>, vector<1x128x128xf32>
      %45 = vector.shape_cast %44 : vector<1x128x128xf32> to vector<128x128xf32>
      %46 = vector.shape_cast %42 : vector<128x128xf32> to vector<1x128x128xf32>
      tpu.vector_store %arg8[%c0_33, %43, %c0_34], %46 {strides = array<i32>} : memref<2x128x128xf32, #tpu.memory_space<vmem>>, vector<1x128x128xf32>,
      %c1_35 = arith.constant 1 : index
      %47 = arith.index_cast %1 : i32 to index
      %c0_36 = arith.constant 0 : index
      %48 = vector.load %arg3[%c1_35, %47, %c0_36] : memref<2x128x128xf32, #tpu.memory_space<vmem>>, vector<1x128x128xf32>
      %49 = vector.shape_cast %48 : vector<1x128x128xf32> to vector<128x128xf32>
      %cst_37 = arith.constant dense<0.000000e+00> : vector<128x128xf32>
      %50 = tpu.matmul %49, %35, %cst_37 {dimension_numbers = #tpu.dot_dimension_numbers<[1], [0], [0], [1], [0, 0, 1, 1], [], []>} : vector<128x128xf32>, vector<128x128xf32>, vector<128x128xf32> -> vector<128x128xf32>
      %51 = vector.broadcast %36 : vector<1x128xf32> to vector<128x128xf32>
      %52 = arith.addf %50, %51 : vector<128x128xf32>
      %c1_38 = arith.constant 1 : index
      %53 = arith.index_cast %1 : i32 to index
      %c0_39 = arith.constant 0 : index
      %54 = vector.load %arg8[%c1_38, %53, %c0_39] : memref<2x128x128xf32, #tpu.memory_space<vmem>>, vector<1x128x128xf32>
      %55 = vector.shape_cast %54 : vector<1x128x128xf32> to vector<128x128xf32>
      %56 = vector.shape_cast %52 : vector<128x128xf32> to vector<1x128x128xf32>
      tpu.vector_store %arg8[%c1_38, %53, %c0_39], %56 {strides = array<i32>} : memref<2x128x128xf32, #tpu.memory_space<vmem>>, vector<1x128x128xf32>,
    } else {
    }
    %c0_i32_1 = arith.constant 0 : i32
    %5 = arith.cmpi eq, %arg2, %c0_i32_1 : i32
    %6 = arith.extui %5 : i1 to i32
    %c0_i32_2 = arith.constant 0 : i32
    %7 = arith.cmpi ne, %6, %c0_i32_2 : i32
    scf.if %7 {
      %cst_26 = arith.constant 0.000000e+00 : f32
      %35 = vector.broadcast %cst_26 : f32 to vector<2x128x128xf32>
      %c0_27 = arith.constant 0 : index
      %c0_28 = arith.constant 0 : index
      %c0_29 = arith.constant 0 : index
      %36 = vector.load %arg9[%c0_27, %c0_28, %c0_29] : memref<2x128x128xf32, #tpu.memory_space<vmem>>, vector<2x128x128xf32>
      tpu.vector_store %arg9[%c0_27, %c0_28, %c0_29], %35 {strides = array<i32>} : memref<2x128x128xf32, #tpu.memory_space<vmem>>, vector<2x128x128xf32>,
    } else {
    }
    %c0 = arith.constant 0 : index
    %c0_3 = arith.constant 0 : index
    %c0_4 = arith.constant 0 : index
    %8 = vector.load %arg4[%c0, %c0_3, %c0_4] : memref<2x128x128xf32, #tpu.memory_space<vmem>>, vector<1x128x128xf32>
    %9 = vector.shape_cast %8 : vector<1x128x128xf32> to vector<128x128xf32>
    %c0_5 = arith.constant 0 : index
    %10 = arith.index_cast %1 : i32 to index
    %c0_6 = arith.constant 0 : index
    %11 = vector.load %arg8[%c0_5, %10, %c0_6] : memref<2x128x128xf32, #tpu.memory_space<vmem>>, vector<1x128x128xf32>
    %12 = vector.shape_cast %11 : vector<1x128x128xf32> to vector<128x128xf32>
    %c0_7 = arith.constant 0 : index
    %c0_8 = arith.constant 0 : index
    %c0_9 = arith.constant 0 : index
    %13 = vector.load %arg9[%c0_7, %c0_8, %c0_9] : memref<2x128x128xf32, #tpu.memory_space<vmem>>, vector<1x128x128xf32>
    %14 = vector.shape_cast %13 : vector<1x128x128xf32> to vector<128x128xf32>
    %cst = arith.constant dense<0.000000e+00> : vector<128x128xf32>
    %15 = tpu.matmul %9, %12, %cst {dimension_numbers = #tpu.dot_dimension_numbers<[1], [0], [0], [1], [0, 0, 1, 1], [], []>} : vector<128x128xf32>, vector<128x128xf32>, vector<128x128xf32> -> vector<128x128xf32>
    %16 = arith.addf %14, %15 : vector<128x128xf32>
    %c0_10 = arith.constant 0 : index
    %c0_11 = arith.constant 0 : index
    %c0_12 = arith.constant 0 : index
    %17 = vector.load %arg9[%c0_10, %c0_11, %c0_12] : memref<2x128x128xf32, #tpu.memory_space<vmem>>, vector<1x128x128xf32>
    %18 = vector.shape_cast %17 : vector<1x128x128xf32> to vector<128x128xf32>
    %19 = vector.shape_cast %16 : vector<128x128xf32> to vector<1x128x128xf32>
    tpu.vector_store %arg9[%c0_10, %c0_11, %c0_12], %19 {strides = array<i32>} : memref<2x128x128xf32, #tpu.memory_space<vmem>>, vector<1x128x128xf32>,
    %c1 = arith.constant 1 : index
    %c0_13 = arith.constant 0 : index
    %c0_14 = arith.constant 0 : index
    %20 = vector.load %arg4[%c1, %c0_13, %c0_14] : memref<2x128x128xf32, #tpu.memory_space<vmem>>, vector<1x128x128xf32>
    %21 = vector.shape_cast %20 : vector<1x128x128xf32> to vector<128x128xf32>
    %c1_15 = arith.constant 1 : index
    %22 = arith.index_cast %1 : i32 to index
    %c0_16 = arith.constant 0 : index
    %23 = vector.load %arg8[%c1_15, %22, %c0_16] : memref<2x128x128xf32, #tpu.memory_space<vmem>>, vector<1x128x128xf32>
    %24 = vector.shape_cast %23 : vector<1x128x128xf32> to vector<128x128xf32>
    %c1_17 = arith.constant 1 : index
    %c0_18 = arith.constant 0 : index
    %c0_19 = arith.constant 0 : index
    %25 = vector.load %arg9[%c1_17, %c0_18, %c0_19] : memref<2x128x128xf32, #tpu.memory_space<vmem>>, vector<1x128x128xf32>
    %26 = vector.shape_cast %25 : vector<1x128x128xf32> to vector<128x128xf32>
    %cst_20 = arith.constant dense<0.000000e+00> : vector<128x128xf32>
    %27 = tpu.matmul %21, %24, %cst_20 {dimension_numbers = #tpu.dot_dimension_numbers<[1], [0], [0], [1], [0, 0, 1, 1], [], []>} : vector<128x128xf32>, vector<128x128xf32>, vector<128x128xf32> -> vector<128x128xf32>
    %28 = arith.addf %26, %27 : vector<128x128xf32>
    %c1_21 = arith.constant 1 : index
    %c0_22 = arith.constant 0 : index
    %c0_23 = arith.constant 0 : index
    %29 = vector.load %arg9[%c1_21, %c0_22, %c0_23] : memref<2x128x128xf32, #tpu.memory_space<vmem>>, vector<1x128x128xf32>
    %30 = vector.shape_cast %29 : vector<1x128x128xf32> to vector<128x128xf32>
    %31 = vector.shape_cast %28 : vector<128x128xf32> to vector<1x128x128xf32>
    tpu.vector_store %arg9[%c1_21, %c0_22, %c0_23], %31 {strides = array<i32>} : memref<2x128x128xf32, #tpu.memory_space<vmem>>, vector<1x128x128xf32>,
    %c0_i32_24 = arith.constant 0 : i32
    %32 = arith.cmpi eq, %arg2, %c0_i32_24 : i32
    %33 = arith.extui %32 : i1 to i32
    %c0_i32_25 = arith.constant 0 : i32
    %34 = arith.cmpi ne, %33, %c0_i32_25 : i32
    scf.if %34 {
      %c0_26 = arith.constant 0 : index
      %c0_27 = arith.constant 0 : index
      %c0_28 = arith.constant 0 : index
      %35 = vector.load %arg9[%c0_26, %c0_27, %c0_28] : memref<2x128x128xf32, #tpu.memory_space<vmem>>, vector<2x128x128xf32>
      %c0_29 = arith.constant 0 : index
      %c0_30 = arith.constant 0 : index
      %c0_31 = arith.constant 0 : index
      %36 = vector.load %arg7[%c0_29, %c0_30, %c0_31] : memref<2x128x128xf32, #tpu.memory_space<vmem>>, vector<2x128x128xf32>
      tpu.vector_store %arg7[%c0_29, %c0_30, %c0_31], %35 {strides = array<i32>} : memref<2x128x128xf32, #tpu.memory_space<vmem>>, vector<2x128x128xf32>,
    } else {
    }
    return
  }
  func.func @transform_0(%arg0: i32, %arg1: i32, %arg2: i32) -> (i32, i32, i32) {
    %c0_i32 = arith.constant 0 : i32
    %c0_i32_0 = arith.constant 0 : i32
    %c0_i32_1 = arith.constant 0 : i32
    return %arg0, %c0_i32, %c0_i32_0 : i32, i32, i32
  }
  func.func @transform_1(%arg0: i32, %arg1: i32, %arg2: i32) -> (i32, i32, i32) {
    %c0_i32 = arith.constant 0 : i32
    return %arg0, %arg1, %arg2 : i32, i32, i32
  }
  func.func @transform_2(%arg0: i32, %arg1: i32, %arg2: i32) -> (i32, i32) {
    %c0_i32 = arith.constant 0 : i32
    %c0_i32_0 = arith.constant 0 : i32
    %c0_i32_1 = arith.constant 0 : i32
    return %c0_i32, %c0_i32_0 : i32, i32
  }
  func.func @transform_3(%arg0: i32, %arg1: i32, %arg2: i32) -> (i32, i32) {
    %c0_i32 = arith.constant 0 : i32
    %c0_i32_0 = arith.constant 0 : i32
    %c0_i32_1 = arith.constant 0 : i32
    return %c0_i32, %c0_i32_0 : i32, i32
  }
  func.func @transform_4(%arg0: i32, %arg1: i32, %arg2: i32) -> (i32, i32, i32) {
    %c0_i32 = arith.constant 0 : i32
    %c0_i32_0 = arith.constant 0 : i32
    return %arg0, %arg1, %c0_i32 : i32, i32, i32
  }
}

</mosaic_0001>

<llo_original>
// kernel: tpu_custom_call.1
$region0: #{tpu_custom_call.1}
  #allocation0 [shape = 'u32[]', space=smem, size = 0x4, offset = 0x4, fixed_abs, tag = 'smem constant byte address 0x4 - core index']
  #allocation1 [shape = 'u32[144,128]{1,0:T(1,128)}', space=vmem, size = 0x12000, scoped, tag = 'internal scratch']
  #allocation2 [shape = 'f32[2,128,128]{2,1,0:T(8,128)}', space=vmem, size = 0x20000, scoped, tag = 'scratch operand']
  #allocation3 [shape = 'f32[2,128,128]{2,1,0:T(8,128)}', space=vmem, size = 0x20000, scoped, tag = 'scratch operand']
  %s0 = inlined_call_operand.hbm [shape: f32[2,128,128], index: 0, kind: input, shape index: {}]
  %s1 = inlined_call_operand.hbm [shape: f32[2,128,128], index: 1, kind: input, shape index: {}]
  %s2 = inlined_call_operand.hbm [shape: f32[128,128], index: 2, kind: input, shape index: {}]
  %s3 = inlined_call_operand.vmem [shape: f32[1,128], index: 3, kind: input, shape index: {}]
  %s4 = inlined_call_operand.hbm [shape: f32[2,128,128], index: 4, kind: output, shape index: {}]
  %s5 = sld [smem:[#allocation0]]
  $region50: #{tpu_custom_call.1} parent=0
    _
  %s7 = ssub.s32 1, %s5
  %s8 = scalar_select 0, %s7, %s5
  $region1: #{tpu_custom_call.1} parent=0
    #allocation4 [shape = 'u8[131072]{0}', space=vmem, size = 0x20000, scoped, tag = 'input window, operand 0, single buffered']
    #allocation5 [shape = 's32[1]{0}', space=sflag, size = 0x4, scoped, tag = 'scoped memory for tpu_custom_call.1']
    #allocation6 [shape = 's32[1]{0}', space=sflag, size = 0x4, scoped, tag = 'scoped memory for tpu_custom_call.1']
    #allocation7 [shape = 'u8[131072]{0}', space=vmem, size = 0x20000, scoped, tag = 'input window, operand 1, single buffered']
    #allocation8 [shape = 's32[1]{0}', space=sflag, size = 0x4, scoped, tag = 'scoped memory for tpu_custom_call.1']
    #allocation9 [shape = 'u8[65536]{0}', space=vmem, size = 0x10000, scoped, tag = 'input window, operand 2, single buffered']
    #allocation10 [shape = 'u8[131072]{0}', space=vmem, size = 0x20000, scoped, tag = 'output window, operand 0, single buffered']
    %9 = vsyncpa [#allocation5], 0
    %10 = vsyncpa [#allocation8], 0
    %11 = vsyncpa [#allocation6], 0
    // Predicated region
    $region2: #{tpu_custom_call.1} parent=1 // pred_check
      _
    $region3: #{tpu_custom_call.1} parent=1 // pred_check_branch
      %13 = sbr.rel (0) target = $region5
    $region4: #{tpu_custom_call.1} parent=1 // pred_region
      %s15 = ssub.s32 4096, 4096
      %16 = vsyncadd [#allocation5], %s15
      %s17 = sshll.u32 [#allocation4], 4
      %s18 = int_to_ptr.vmem [resolvable:$true] %s17
      %23 = dma.hbm_to_vmem [thread:$0]  %s0, 4096, %s18, [#allocation5], 128, 128, 8
    $region5: #{tpu_custom_call.1} parent=1 // pred_fallthru
      _
    // Predicated region
    $region6: #{tpu_custom_call.1} parent=1 // pred_check
      _
    $region7: #{tpu_custom_call.1} parent=1 // pred_check_branch
      %25 = sbr.rel (0) target = $region9
    $region8: #{tpu_custom_call.1} parent=1 // pred_region
      %s27 = ssub.s32 4096, 4096
      %28 = vsyncadd [#allocation8], %s27
      %s29 = sshll.u32 [#allocation7], 4
      %s30 = int_to_ptr.vmem [resolvable:$true] %s29
      %35 = dma.hbm_to_vmem [thread:$0]  %s1, 4096, %s30, [#allocation8], 128, 128, 8
    $region9: #{tpu_custom_call.1} parent=1 // pred_fallthru
      _
    // Predicated region
    $region10: #{tpu_custom_call.1} parent=1 // pred_check
      _
    $region11: #{tpu_custom_call.1} parent=1 // pred_check_branch
      %37 = sbr.rel (0) target = $region13
    $region12: #{tpu_custom_call.1} parent=1 // pred_region
      %s39 = ssub.s32 2048, 2048
      %40 = vsyncadd [#allocation8], %s39
      %s41 = sshll.u32 [#allocation9], 4
      %s42 = int_to_ptr.vmem [resolvable:$true] %s41
      %47 = dma.hbm_to_vmem [thread:$0]  %s2, 2048, %s42, [#allocation8], 128, 128, 8
    $region13: #{tpu_custom_call.1} parent=1 // pred_fallthru
      _
    // Predicated region
    $region14: #{tpu_custom_call.1} parent=1 // pred_check
      _
    $region15: #{tpu_custom_call.1} parent=1 // pred_check_branch
      %49 = sbr.rel (0) target = $region17
    $region16: #{tpu_custom_call.1} parent=1 // pred_region
      _
    $region17: #{tpu_custom_call.1} parent=1 // pred_fallthru
      _
    // Predicated region
    $region18: #{tpu_custom_call.1} parent=1 // pred_check
      _
    $region19: #{tpu_custom_call.1} parent=1 // pred_check_branch
      %51 = sbr.rel (0) target = $region21
    $region20: #{tpu_custom_call.1} parent=1 // pred_region
      %52 = dma.done [#allocation5], 4096
    $region21: #{tpu_custom_call.1} parent=1 // pred_fallthru
      _
    // Predicated region
    $region22: #{tpu_custom_call.1} parent=1 // pred_check
      _
    $region23: #{tpu_custom_call.1} parent=1 // pred_check_branch
      %54 = sbr.rel (0) target = $region25
    $region24: #{tpu_custom_call.1} parent=1 // pred_region
      %55 = dma.done [#allocation8], 4096
    $region25: #{tpu_custom_call.1} parent=1 // pred_fallthru
      _
    // Predicated region
    $region26: #{tpu_custom_call.1} parent=1 // pred_check
      _
    $region27: #{tpu_custom_call.1} parent=1 // pred_check_branch
      %57 = sbr.rel (0) target = $region29
    $region28: #{tpu_custom_call.1} parent=1 // pred_region
      %58 = dma.done [#allocation8], 2048
    $region29: #{tpu_custom_call.1} parent=1 // pred_fallthru
      _
    %s59 = smul.u32 0, 128
    %p60 = scmp.eq.s32.totalorder 0, 0
    // Predicated region
    $region30: #{tpu_custom_call.1} parent=1 // pred_check
      %p61 = pneg %p60
    $region31: #{tpu_custom_call.1} parent=1 // pred_check_branch
      %63 = sbr.rel (%p61) target = $region33
    $region32: #{tpu_custom_call.1} parent=1 // pred_region
      %v64 = vld [vmem:[#allocation9] sm:$0xff]
      %v65 = vld [vmem:[#allocation9 + $0x8] sm:$0xff]
      %v66 = vld [vmem:[#allocation9 + $0x10] sm:$0xff]
      %v67 = vld [vmem:[#allocation9 + $0x18] sm:$0xff]
      %v68 = vld [vmem:[#allocation9 + $0x20] sm:$0xff]
      %v69 = vld [vmem:[#allocation9 + $0x28] sm:$0xff]
      %v70 = vld [vmem:[#allocation9 + $0x30] sm:$0xff]
      %v71 = vld [vmem:[#allocation9 + $0x38] sm:$0xff]
      %v72 = vld [vmem:[#allocation9 + $0x40] sm:$0xff]
      %v73 = vld [vmem:[#allocation9 + $0x48] sm:$0xff]
      %v74 = vld [vmem:[#allocation9 + $0x50] sm:$0xff]
      %v75 = vld [vmem:[#allocation9 + $0x58] sm:$0xff]
      %v76 = vld [vmem:[#allocation9 + $0x60] sm:$0xff]
      %v77 = vld [vmem:[#allocation9 + $0x68] sm:$0xff]
      %v78 = vld [vmem:[#allocation9 + $0x70] sm:$0xff]
      %v79 = vld [vmem:[#allocation9 + $0x78] sm:$0xff]
      %v80 = vld [vmem:[%s3] sm:$0x1]
      %s81 = scalar_lea.vmem [#allocation4], %s59
      %v82 = vld [vmem:[%s81] sm:$0xff]
      %v83 = vld [vmem:[%s81 + $0x8] sm:$0xff]
      %v84 = vld [vmem:[%s81 + $0x10] sm:$0xff]
      %v85 = vld [vmem:[%s81 + $0x18] sm:$0xff]
      %v86 = vld [vmem:[%s81 + $0x20] sm:$0xff]
      %v87 = vld [vmem:[%s81 + $0x28] sm:$0xff]
      %v88 = vld [vmem:[%s81 + $0x30] sm:$0xff]
      %v89 = vld [vmem:[%s81 + $0x38] sm:$0xff]
      %v90 = vld [vmem:[%s81 + $0x40] sm:$0xff]
      %v91 = vld [vmem:[%s81 + $0x48] sm:$0xff]
      %v92 = vld [vmem:[%s81 + $0x50] sm:$0xff]
      %v93 = vld [vmem:[%s81 + $0x58] sm:$0xff]
      %v94 = vld [vmem:[%s81 + $0x60] sm:$0xff]
      %v95 = vld [vmem:[%s81 + $0x68] sm:$0xff]
      %v96 = vld [vmem:[%s81 + $0x70] sm:$0xff]
      %v97 = vld [vmem:[%s81 + $0x78] sm:$0xff]
      %v99 = vlaneseq
      %v100 = vshrl.u32 %v99, 7
      %v101 = vsub.s32 0, %v100
      %v102 = vrot.slane %v80, %v101
      %104 = vmatprep.subr.mxu0 0.0
      %105 = vmatpush1.msra.mxu0 %v79
      %106 = vmatprep.subr.mxu0 0.0
      %107 = vmatpush1.msra.mxu0 %v78
      %108 = vmatprep.subr.mxu0 0.0
      %109 = vmatpush1.msra.mxu0 %v77
      %110 = vmatprep.subr.mxu0 0.0
      %111 = vmatpush1.msra.mxu0 %v76
      %112 = vmatprep.subr.mxu0 0.0
      %113 = vmatpush1.msra.mxu0 %v75
      %114 = vmatprep.subr.mxu0 0.0
      %115 = vmatpush1.msra.mxu0 %v74
      %116 = vmatprep.subr.mxu0 0.0
      %117 = vmatpush1.msra.mxu0 %v73
      %118 = vmatprep.subr.mxu0 0.0
      %119 = vmatpush1.msra.mxu0 %v72
      %120 = vmatprep.subr.mxu0 0.0
      %121 = vmatpush1.msra.mxu0 %v71
      %122 = vmatprep.subr.mxu0 0.0
      %123 = vmatpush1.msra.mxu0 %v70
      %124 = vmatprep.subr.mxu0 0.0
      %125 = vmatpush1.msra.mxu0 %v69
      %126 = vmatprep.subr.mxu0 0.0
      %127 = vmatpush1.msra.mxu0 %v68
      %128 = vmatprep.subr.mxu0 0.0
      %129 = vmatpush1.msra.mxu0 %v67
      %130 = vmatprep.subr.mxu0 0.0
      %131 = vmatpush1.msra.mxu0 %v66
      %132 = vmatprep.subr.mxu0 0.0
      %133 = vmatpush1.msra.mxu0 %v65
      %134 = vmatprep.subr.mxu0 0.0
      %135 = vmatpush1.msra.mxu0 %v64
      %136 = vmatprep.subr.mxu0 0.0
      %137 = vmatpush2.msra.mxu0 0.0
      %138 = vmatprep.subr.mxu0 0.0
      %139 = vmatpush2.msra.mxu0 0.0
      %140 = vmatprep.subr.mxu0 0.0
      %141 = vmatpush2.msra.mxu0 0.0
      %142 = vmatprep.subr.mxu0 0.0
      %143 = vmatpush2.msra.mxu0 0.0
      %144 = vmatprep.subr.mxu0 0.0
      %145 = vmatpush2.msra.mxu0 0.0
      %146 = vmatprep.subr.mxu0 0.0
      %147 = vmatpush2.msra.mxu0 0.0
      %148 = vmatprep.subr.mxu0 0.0
      %149 = vmatpush2.msra.mxu0 0.0
      %150 = vmatprep.subr.mxu0 0.0
      %151 = vmatpush2.msra.mxu0 0.0
      %152 = vmatprep.subr.mxu0 0.0
      %153 = vmatpush2.msra.mxu0 0.0
      %154 = vmatprep.subr.mxu0 0.0
      %155 = vmatpush2.msra.mxu0 0.0
      %156 = vmatprep.subr.mxu0 0.0
      %157 = vmatpush2.msra.mxu0 0.0
      %158 = vmatprep.subr.mxu0 0.0
      %159 = vmatpush2.msra.mxu0 0.0
      %160 = vmatprep.subr.mxu0 0.0
      %161 = vmatpush2.msra.mxu0 0.0
      %162 = vmatprep.subr.mxu0 0.0
      %163 = vmatpush2.msra.mxu0 0.0
      %164 = vmatprep.subr.mxu0 0.0
      %165 = vmatpush2.msra.mxu0 0.0
      %166 = vmatprep.subr.mxu0 0.0
      %167 = vmatpush2.msra.mxu0 0.0
      %168 = vmatprep.mubr.f32.mxu0 0.0
      %169 = vmatmul.mubr.f32.gmra.mxu0 %v82
      %v170 = vpop.f32.mrf.mxu0
      %v171 = vadd.f32 %v102, %v170
      %v172 = vpop.f32.mrf.mxu0
      %173 = vmatprep.mubr.f32.mxu0 0.0
      %174 = vmatmul.mubr.f32.gmra.mxu0 %v83
      %v175 = vpop.f32.mrf.mxu0
      %v176 = vadd.f32 %v102, %v175
      %v177 = vpop.f32.mrf.mxu0
      %178 = vmatprep.mubr.f32.mxu0 0.0
      %179 = vmatmul.mubr.f32.gmra.mxu0 %v84
      %v180 = vpop.f32.mrf.mxu0
      %v181 = vadd.f32 %v102, %v180
      %v182 = vpop.f32.mrf.mxu0
      %183 = vmatprep.mubr.f32.mxu0 0.0
      %184 = vmatmul.mubr.f32.gmra.mxu0 %v85
      %v185 = vpop.f32.mrf.mxu0
      %v186 = vadd.f32 %v102, %v185
      %v187 = vpop.f32.mrf.mxu0
      %188 = vmatprep.mubr.f32.mxu0 0.0
      %189 = vmatmul.mubr.f32.gmra.mxu0 %v86
      %v190 = vpop.f32.mrf.mxu0
      %v191 = vadd.f32 %v102, %v190
      %v192 = vpop.f32.mrf.mxu0
      %193 = vmatprep.mubr.f32.mxu0 0.0
      %194 = vmatmul.mubr.f32.gmra.mxu0 %v87
      %v195 = vpop.f32.mrf.mxu0
      %v196 = vadd.f32 %v102, %v195
      %v197 = vpop.f32.mrf.mxu0
      %198 = vmatprep.mubr.f32.mxu0 0.0
      %199 = vmatmul.mubr.f32.gmra.mxu0 %v88
      %v200 = vpop.f32.mrf.mxu0
      %v201 = vadd.f32 %v102, %v200
      %v202 = vpop.f32.mrf.mxu0
      %203 = vmatprep.mubr.f32.mxu0 0.0
      %204 = vmatmul.mubr.f32.gmra.mxu0 %v89
      %v205 = vpop.f32.mrf.mxu0
      %v206 = vadd.f32 %v102, %v205
      %v207 = vpop.f32.mrf.mxu0
      %208 = vmatprep.mubr.f32.mxu0 0.0
      %209 = vmatmul.mubr.f32.gmra.mxu0 %v90
      %v210 = vpop.f32.mrf.mxu0
      %v211 = vadd.f32 %v102, %v210
      %v212 = vpop.f32.mrf.mxu0
      %213 = vmatprep.mubr.f32.mxu0 0.0
      %214 = vmatmul.mubr.f32.gmra.mxu0 %v91
      %v215 = vpop.f32.mrf.mxu0
      %v216 = vadd.f32 %v102, %v215
      %v217 = vpop.f32.mrf.mxu0
      %218 = vmatprep.mubr.f32.mxu0 0.0
      %219 = vmatmul.mubr.f32.gmra.mxu0 %v92
      %v220 = vpop.f32.mrf.mxu0
      %v221 = vadd.f32 %v102, %v220
      %v222 = vpop.f32.mrf.mxu0
      %223 = vmatprep.mubr.f32.mxu0 0.0
      %224 = vmatmul.mubr.f32.gmra.mxu0 %v93
      %v225 = vpop.f32.mrf.mxu0
      %v226 = vadd.f32 %v102, %v225
      %v227 = vpop.f32.mrf.mxu0
      %228 = vmatprep.mubr.f32.mxu0 0.0
      %229 = vmatmul.mubr.f32.gmra.mxu0 %v94
      %v230 = vpop.f32.mrf.mxu0
      %v231 = vadd.f32 %v102, %v230
      %v232 = vpop.f32.mrf.mxu0
      %233 = vmatprep.mubr.f32.mxu0 0.0
      %234 = vmatmul.mubr.f32.gmra.mxu0 %v95
      %v235 = vpop.f32.mrf.mxu0
      %v236 = vadd.f32 %v102, %v235
      %v237 = vpop.f32.mrf.mxu0
      %238 = vmatprep.mubr.f32.mxu0 0.0
      %239 = vmatmul.mubr.f32.gmra.mxu0 %v96
      %v240 = vpop.f32.mrf.mxu0
      %v241 = vadd.f32 %v102, %v240
      %v242 = vpop.f32.mrf.mxu0
      %243 = vmatprep.mubr.f32.mxu0 0.0
      %244 = vmatmul.mubr.f32.gmra.mxu0 %v97
      %v245 = vpop.f32.mrf.mxu0
      %v246 = vadd.f32 %v102, %v245
      %v247 = vpop.f32.mrf.mxu0
      %248 = vdwg.mxu0
      %s249 = scalar_lea.vmem [#allocation2], %s59
      %250 = vst [vmem:[%s249] sm:$0xff] %v171
      %251 = vst [vmem:[%s249 + $0x8] sm:$0xff] %v176
      %252 = vst [vmem:[%s249 + $0x10] sm:$0xff] %v181
      %253 = vst [vmem:[%s249 + $0x18] sm:$0xff] %v186
      %254 = vst [vmem:[%s249 + $0x20] sm:$0xff] %v191
      %255 = vst [vmem:[%s249 + $0x28] sm:$0xff] %v196
      %256 = vst [vmem:[%s249 + $0x30] sm:$0xff] %v201
      %257 = vst [vmem:[%s249 + $0x38] sm:$0xff] %v206
      %258 = vst [vmem:[%s249 + $0x40] sm:$0xff] %v211
      %259 = vst [vmem:[%s249 + $0x48] sm:$0xff] %v216
      %260 = vst [vmem:[%s249 + $0x50] sm:$0xff] %v221
      %261 = vst [vmem:[%s249 + $0x58] sm:$0xff] %v226
      %262 = vst [vmem:[%s249 + $0x60] sm:$0xff] %v231
      %263 = vst [vmem:[%s249 + $0x68] sm:$0xff] %v236
      %264 = vst [vmem:[%s249 + $0x70] sm:$0xff] %v241
      %265 = vst [vmem:[%s249 + $0x78] sm:$0xff] %v246
      %s266 = sadd.s32 %s59, 128
      %s267 = scalar_lea.vmem [#allocation4], %s266
      %v268 = vld [vmem:[%s267] sm:$0xff]
      %v269 = vld [vmem:[%s267 + $0x8] sm:$0xff]
      %v270 = vld [vmem:[%s267 + $0x10] sm:$0xff]
      %v271 = vld [vmem:[%s267 + $0x18] sm:$0xff]
      %v272 = vld [vmem:[%s267 + $0x20] sm:$0xff]
      %v273 = vld [vmem:[%s267 + $0x28] sm:$0xff]
      %v274 = vld [vmem:[%s267 + $0x30] sm:$0xff]
      %v275 = vld [vmem:[%s267 + $0x38] sm:$0xff]
      %v276 = vld [vmem:[%s267 + $0x40] sm:$0xff]
      %v277 = vld [vmem:[%s267 + $0x48] sm:$0xff]
      %v278 = vld [vmem:[%s267 + $0x50] sm:$0xff]
      %v279 = vld [vmem:[%s267 + $0x58] sm:$0xff]
      %v280 = vld [vmem:[%s267 + $0x60] sm:$0xff]
      %v281 = vld [vmem:[%s267 + $0x68] sm:$0xff]
      %v282 = vld [vmem:[%s267 + $0x70] sm:$0xff]
      %v283 = vld [vmem:[%s267 + $0x78] sm:$0xff]
      %284 = vmatprep.subr.mxu0 0.0
      %285 = vmatpush1.msra.mxu0 %v79
      %286 = vmatprep.subr.mxu0 0.0
      %287 = vmatpush1.msra.mxu0 %v78
      %288 = vmatprep.subr.mxu0 0.0
      %289 = vmatpush1.msra.mxu0 %v77
      %290 = vmatprep.subr.mxu0 0.0
      %291 = vmatpush1.msra.mxu0 %v76
      %292 = vmatprep.subr.mxu0 0.0
      %293 = vmatpush1.msra.mxu0 %v75
      %294 = vmatprep.subr.mxu0 0.0
      %295 = vmatpush1.msra.mxu0 %v74
      %296 = vmatprep.subr.mxu0 0.0
      %297 = vmatpush1.msra.mxu0 %v73
      %298 = vmatprep.subr.mxu0 0.0
      %299 = vmatpush1.msra.mxu0 %v72
      %300 = vmatprep.subr.mxu0 0.0
      %301 = vmatpush1.msra.mxu0 %v71
      %302 = vmatprep.subr.mxu0 0.0
      %303 = vmatpush1.msra.mxu0 %v70
      %304 = vmatprep.subr.mxu0 0.0
      %305 = vmatpush1.msra.mxu0 %v69
      %306 = vmatprep.subr.mxu0 0.0
      %307 = vmatpush1.msra.mxu0 %v68
      %308 = vmatprep.subr.mxu0 0.0
      %309 = vmatpush1.msra.mxu0 %v67
      %310 = vmatprep.subr.mxu0 0.0
      %311 = vmatpush1.msra.mxu0 %v66
      %312 = vmatprep.subr.mxu0 0.0
      %313 = vmatpush1.msra.mxu0 %v65
      %314 = vmatprep.subr.mxu0 0.0
      %315 = vmatpush1.msra.mxu0 %v64
      %316 = vmatprep.subr.mxu0 0.0
      %317 = vmatpush2.msra.mxu0 0.0
      %318 = vmatprep.subr.mxu0 0.0
      %319 = vmatpush2.msra.mxu0 0.0
      %320 = vmatprep.subr.mxu0 0.0
      %321 = vmatpush2.msra.mxu0 0.0
      %322 = vmatprep.subr.mxu0 0.0
      %323 = vmatpush2.msra.mxu0 0.0
      %324 = vmatprep.subr.mxu0 0.0
      %325 = vmatpush2.msra.mxu0 0.0
      %326 = vmatprep.subr.mxu0 0.0
      %327 = vmatpush2.msra.mxu0 0.0
      %328 = vmatprep.subr.mxu0 0.0
      %329 = vmatpush2.msra.mxu0 0.0
      %330 = vmatprep.subr.mxu0 0.0
      %331 = vmatpush2.msra.mxu0 0.0
      %332 = vmatprep.subr.mxu0 0.0
      %333 = vmatpush2.msra.mxu0 0.0
      %334 = vmatprep.subr.mxu0 0.0
      %335 = vmatpush2.msra.mxu0 0.0
      %336 = vmatprep.subr.mxu0 0.0
      %337 = vmatpush2.msra.mxu0 0.0
      %338 = vmatprep.subr.mxu0 0.0
      %339 = vmatpush2.msra.mxu0 0.0
      %340 = vmatprep.subr.mxu0 0.0
      %341 = vmatpush2.msra.mxu0 0.0
      %342 = vmatprep.subr.mxu0 0.0
      %343 = vmatpush2.msra.mxu0 0.0
      %344 = vmatprep.subr.mxu0 0.0
      %345 = vmatpush2.msra.mxu0 0.0
      %346 = vmatprep.subr.mxu0 0.0
      %347 = vmatpush2.msra.mxu0 0.0
      %348 = vmatprep.mubr.f32.mxu0 0.0
      %349 = vmatmul.mubr.f32.gmra.mxu0 %v268
      %v350 = vpop.f32.mrf.mxu0
      %v351 = vadd.f32 %v102, %v350
      %v352 = vpop.f32.mrf.mxu0
      %353 = vmatprep.mubr.f32.mxu0 0.0
      %354 = vmatmul.mubr.f32.gmra.mxu0 %v269
      %v355 = vpop.f32.mrf.mxu0
      %v356 = vadd.f32 %v102, %v355
      %v357 = vpop.f32.mrf.mxu0
      %358 = vmatprep.mubr.f32.mxu0 0.0
      %359 = vmatmul.mubr.f32.gmra.mxu0 %v270
      %v360 = vpop.f32.mrf.mxu0
      %v361 = vadd.f32 %v102, %v360
      %v362 = vpop.f32.mrf.mxu0
      %363 = vmatprep.mubr.f32.mxu0 0.0
      %364 = vmatmul.mubr.f32.gmra.mxu0 %v271
      %v365 = vpop.f32.mrf.mxu0
      %v366 = vadd.f32 %v102, %v365
      %v367 = vpop.f32.mrf.mxu0
      %368 = vmatprep.mubr.f32.mxu0 0.0
      %369 = vmatmul.mubr.f32.gmra.mxu0 %v272
      %v370 = vpop.f32.mrf.mxu0
      %v371 = vadd.f32 %v102, %v370
      %v372 = vpop.f32.mrf.mxu0
      %373 = vmatprep.mubr.f32.mxu0 0.0
      %374 = vmatmul.mubr.f32.gmra.mxu0 %v273
      %v375 = vpop.f32.mrf.mxu0
      %v376 = vadd.f32 %v102, %v375
      %v377 = vpop.f32.mrf.mxu0
      %378 = vmatprep.mubr.f32.mxu0 0.0
      %379 = vmatmul.mubr.f32.gmra.mxu0 %v274
      %v380 = vpop.f32.mrf.mxu0
      %v381 = vadd.f32 %v102, %v380
      %v382 = vpop.f32.mrf.mxu0
      %383 = vmatprep.mubr.f32.mxu0 0.0
      %384 = vmatmul.mubr.f32.gmra.mxu0 %v275
      %v385 = vpop.f32.mrf.mxu0
      %v386 = vadd.f32 %v102, %v385
      %v387 = vpop.f32.mrf.mxu0
      %388 = vmatprep.mubr.f32.mxu0 0.0
      %389 = vmatmul.mubr.f32.gmra.mxu0 %v276
      %v390 = vpop.f32.mrf.mxu0
      %v391 = vadd.f32 %v102, %v390
      %v392 = vpop.f32.mrf.mxu0
      %393 = vmatprep.mubr.f32.mxu0 0.0
      %394 = vmatmul.mubr.f32.gmra.mxu0 %v277
      %v395 = vpop.f32.mrf.mxu0
      %v396 = vadd.f32 %v102, %v395
      %v397 = vpop.f32.mrf.mxu0
      %398 = vmatprep.mubr.f32.mxu0 0.0
      %399 = vmatmul.mubr.f32.gmra.mxu0 %v278
      %v400 = vpop.f32.mrf.mxu0
      %v401 = vadd.f32 %v102, %v400
      %v402 = vpop.f32.mrf.mxu0
      %403 = vmatprep.mubr.f32.mxu0 0.0
      %404 = vmatmul.mubr.f32.gmra.mxu0 %v279
      %v405 = vpop.f32.mrf.mxu0
      %v406 = vadd.f32 %v102, %v405
      %v407 = vpop.f32.mrf.mxu0
      %408 = vmatprep.mubr.f32.mxu0 0.0
      %409 = vmatmul.mubr.f32.gmra.mxu0 %v280
      %v410 = vpop.f32.mrf.mxu0
      %v411 = vadd.f32 %v102, %v410
      %v412 = vpop.f32.mrf.mxu0
      %413 = vmatprep.mubr.f32.mxu0 0.0
      %414 = vmatmul.mubr.f32.gmra.mxu0 %v281
      %v415 = vpop.f32.mrf.mxu0
      %v416 = vadd.f32 %v102, %v415
      %v417 = vpop.f32.mrf.mxu0
      %418 = vmatprep.mubr.f32.mxu0 0.0
      %419 = vmatmul.mubr.f32.gmra.mxu0 %v282
      %v420 = vpop.f32.mrf.mxu0
      %v421 = vadd.f32 %v102, %v420
      %v422 = vpop.f32.mrf.mxu0
      %423 = vmatprep.mubr.f32.mxu0 0.0
      %424 = vmatmul.mubr.f32.gmra.mxu0 %v283
      %v425 = vpop.f32.mrf.mxu0
      %v426 = vadd.f32 %v102, %v425
      %v427 = vpop.f32.mrf.mxu0
      %428 = vdwg.mxu0
      %s429 = scalar_lea.vmem [#allocation2], %s266
      %430 = vst [vmem:[%s429] sm:$0xff] %v351
      %431 = vst [vmem:[%s429 + $0x8] sm:$0xff] %v356
      %432 = vst [vmem:[%s429 + $0x10] sm:$0xff] %v361
      %433 = vst [vmem:[%s429 + $0x18] sm:$0xff] %v366
      %434 = vst [vmem:[%s429 + $0x20] sm:$0xff] %v371
      %435 = vst [vmem:[%s429 + $0x28] sm:$0xff] %v376
      %436 = vst [vmem:[%s429 + $0x30] sm:$0xff] %v381
      %437 = vst [vmem:[%s429 + $0x38] sm:$0xff] %v386
      %438 = vst [vmem:[%s429 + $0x40] sm:$0xff] %v391
      %439 = vst [vmem:[%s429 + $0x48] sm:$0xff] %v396
      %440 = vst [vmem:[%s429 + $0x50] sm:$0xff] %v401
      %441 = vst [vmem:[%s429 + $0x58] sm:$0xff] %v406
      %442 = vst [vmem:[%s429 + $0x60] sm:$0xff] %v411
      %443 = vst [vmem:[%s429 + $0x68] sm:$0xff] %v416
      %444 = vst [vmem:[%s429 + $0x70] sm:$0xff] %v421
      %445 = vst [vmem:[%s429 + $0x78] sm:$0xff] %v426
    $region33: #{tpu_custom_call.1} parent=1 // pred_fallthru
      _
    %p446 = scmp.eq.s32.totalorder 0, 0
    // Predicated region
    $region34: #{tpu_custom_call.1} parent=1 // pred_check
      %p447 = pneg %p446
    $region35: #{tpu_custom_call.1} parent=1 // pred_check_branch
      %449 = sbr.rel (%p447) target = $region37
    $region36: #{tpu_custom_call.1} parent=1 // pred_region
      %450 = vst [vmem:[#allocation3] sm:$0xff] 0.0
      %451 = vst [vmem:[#allocation3 + $0x8] sm:$0xff] 0.0
      %452 = vst [vmem:[#allocation3 + $0x10] sm:$0xff] 0.0
      %453 = vst [vmem:[#allocation3 + $0x18] sm:$0xff] 0.0
      %454 = vst [vmem:[#allocation3 + $0x20] sm:$0xff] 0.0
      %455 = vst [vmem:[#allocation3 + $0x28] sm:$0xff] 0.0
      %456 = vst [vmem:[#allocation3 + $0x30] sm:$0xff] 0.0
      %457 = vst [vmem:[#allocation3 + $0x38] sm:$0xff] 0.0
      %458 = vst [vmem:[#allocation3 + $0x40] sm:$0xff] 0.0
      %459 = vst [vmem:[#allocation3 + $0x48] sm:$0xff] 0.0
      %460 = vst [vmem:[#allocation3 + $0x50] sm:$0xff] 0.0
      %461 = vst [vmem:[#allocation3 + $0x58] sm:$0xff] 0.0
      %462 = vst [vmem:[#allocation3 + $0x60] sm:$0xff] 0.0
      %463 = vst [vmem:[#allocation3 + $0x68] sm:$0xff] 0.0
      %464 = vst [vmem:[#allocation3 + $0x70] sm:$0xff] 0.0
      %465 = vst [vmem:[#allocation3 + $0x78] sm:$0xff] 0.0
      %466 = vst [vmem:[#allocation3 + $0x80] sm:$0xff] 0.0
      %467 = vst [vmem:[#allocation3 + $0x88] sm:$0xff] 0.0
      %468 = vst [vmem:[#allocation3 + $0x90] sm:$0xff] 0.0
      %469 = vst [vmem:[#allocation3 + $0x98] sm:$0xff] 0.0
      %470 = vst [vmem:[#allocation3 + $0xa0] sm:$0xff] 0.0
      %471 = vst [vmem:[#allocation3 + $0xa8] sm:$0xff] 0.0
      %472 = vst [vmem:[#allocation3 + $0xb0] sm:$0xff] 0.0
      %473 = vst [vmem:[#allocation3 + $0xb8] sm:$0xff] 0.0
      %474 = vst [vmem:[#allocation3 + $0xc0] sm:$0xff] 0.0
      %475 = vst [vmem:[#allocation3 + $0xc8] sm:$0xff] 0.0
      %476 = vst [vmem:[#allocation3 + $0xd0] sm:$0xff] 0.0
      %477 = vst [vmem:[#allocation3 + $0xd8] sm:$0xff] 0.0
      %478 = vst [vmem:[#allocation3 + $0xe0] sm:$0xff] 0.0
      %479 = vst [vmem:[#allocation3 + $0xe8] sm:$0xff] 0.0
      %480 = vst [vmem:[#allocation3 + $0xf0] sm:$0xff] 0.0
      %481 = vst [vmem:[#allocation3 + $0xf8] sm:$0xff] 0.0
    $region37: #{tpu_custom_call.1} parent=1 // pred_fallthru
      _
    %v482 = vld [vmem:[#allocation7] sm:$0xff]
    %v483 = vld [vmem:[#allocation7 + $0x8] sm:$0xff]
    %v484 = vld [vmem:[#allocation7 + $0x10] sm:$0xff]
    %v485 = vld [vmem:[#allocation7 + $0x18] sm:$0xff]
    %v486 = vld [vmem:[#allocation7 + $0x20] sm:$0xff]
    %v487 = vld [vmem:[#allocation7 + $0x28] sm:$0xff]
    %v488 = vld [vmem:[#allocation7 + $0x30] sm:$0xff]
    %v489 = vld [vmem:[#allocation7 + $0x38] sm:$0xff]
    %v490 = vld [vmem:[#allocation7 + $0x40] sm:$0xff]
    %v491 = vld [vmem:[#allocation7 + $0x48] sm:$0xff]
    %v492 = vld [vmem:[#allocation7 + $0x50] sm:$0xff]
    %v493 = vld [vmem:[#allocation7 + $0x58] sm:$0xff]
    %v494 = vld [vmem:[#allocation7 + $0x60] sm:$0xff]
    %v495 = vld [vmem:[#allocation7 + $0x68] sm:$0xff]
    %v496 = vld [vmem:[#allocation7 + $0x70] sm:$0xff]
    %v497 = vld [vmem:[#allocation7 + $0x78] sm:$0xff]
    %s498 = scalar_lea.vmem [#allocation2], %s59
    %v499 = vld [vmem:[%s498] sm:$0xff]
    %v500 = vld [vmem:[%s498 + $0x8] sm:$0xff]
    %v501 = vld [vmem:[%s498 + $0x10] sm:$0xff]
    %v502 = vld [vmem:[%s498 + $0x18] sm:$0xff]
    %v503 = vld [vmem:[%s498 + $0x20] sm:$0xff]
    %v504 = vld [vmem:[%s498 + $0x28] sm:$0xff]
    %v505 = vld [vmem:[%s498 + $0x30] sm:$0xff]
    %v506 = vld [vmem:[%s498 + $0x38] sm:$0xff]
    %v507 = vld [vmem:[%s498 + $0x40] sm:$0xff]
    %v508 = vld [vmem:[%s498 + $0x48] sm:$0xff]
    %v509 = vld [vmem:[%s498 + $0x50] sm:$0xff]
    %v510 = vld [vmem:[%s498 + $0x58] sm:$0xff]
    %v511 = vld [vmem:[%s498 + $0x60] sm:$0xff]
    %v512 = vld [vmem:[%s498 + $0x68] sm:$0xff]
    %v513 = vld [vmem:[%s498 + $0x70] sm:$0xff]
    %v514 = vld [vmem:[%s498 + $0x78] sm:$0xff]
    %v515 = vld [vmem:[#allocation3] sm:$0xff]
    %v516 = vld [vmem:[#allocation3 + $0x8] sm:$0xff]
    %v517 = vld [vmem:[#allocation3 + $0x10] sm:$0xff]
    %v518 = vld [vmem:[#allocation3 + $0x18] sm:$0xff]
    %v519 = vld [vmem:[#allocation3 + $0x20] sm:$0xff]
    %v520 = vld [vmem:[#allocation3 + $0x28] sm:$0xff]
    %v521 = vld [vmem:[#allocation3 + $0x30] sm:$0xff]
    %v522 = vld [vmem:[#allocation3 + $0x38] sm:$0xff]
    %v523 = vld [vmem:[#allocation3 + $0x40] sm:$0xff]
    %v524 = vld [vmem:[#allocation3 + $0x48] sm:$0xff]
    %v525 = vld [vmem:[#allocation3 + $0x50] sm:$0xff]
    %v526 = vld [vmem:[#allocation3 + $0x58] sm:$0xff]
    %v527 = vld [vmem:[#allocation3 + $0x60] sm:$0xff]
    %v528 = vld [vmem:[#allocation3 + $0x68] sm:$0xff]
    %v529 = vld [vmem:[#allocation3 + $0x70] sm:$0xff]
    %v530 = vld [vmem:[#allocation3 + $0x78] sm:$0xff]
    %531 = vmatprep.subr.mxu0 0.0
    %532 = vmatpush1.msra.mxu0 %v514
    %533 = vmatprep.subr.mxu0 0.0
    %534 = vmatpush1.msra.mxu0 %v513
    %535 = vmatprep.subr.mxu0 0.0
    %536 = vmatpush1.msra.mxu0 %v512
    %537 = vmatprep.subr.mxu0 0.0
    %538 = vmatpush1.msra.mxu0 %v511
    %539 = vmatprep.subr.mxu0 0.0
    %540 = vmatpush1.msra.mxu0 %v510
    %541 = vmatprep.subr.mxu0 0.0
    %542 = vmatpush1.msra.mxu0 %v509
    %543 = vmatprep.subr.mxu0 0.0
    %544 = vmatpush1.msra.mxu0 %v508
    %545 = vmatprep.subr.mxu0 0.0
    %546 = vmatpush1.msra.mxu0 %v507
    %547 = vmatprep.subr.mxu0 0.0
    %548 = vmatpush1.msra.mxu0 %v506
    %549 = vmatprep.subr.mxu0 0.0
    %550 = vmatpush1.msra.mxu0 %v505
    %551 = vmatprep.subr.mxu0 0.0
    %552 = vmatpush1.msra.mxu0 %v504
    %553 = vmatprep.subr.mxu0 0.0
    %554 = vmatpush1.msra.mxu0 %v503
    %555 = vmatprep.subr.mxu0 0.0
    %556 = vmatpush1.msra.mxu0 %v502
    %557 = vmatprep.subr.mxu0 0.0
    %558 = vmatpush1.msra.mxu0 %v501
    %559 = vmatprep.subr.mxu0 0.0
    %560 = vmatpush1.msra.mxu0 %v500
    %561 = vmatprep.subr.mxu0 0.0
    %562 = vmatpush1.msra.mxu0 %v499
    %563 = vmatprep.subr.mxu0 0.0
    %564 = vmatpush2.msra.mxu0 0.0
    %565 = vmatprep.subr.mxu0 0.0
    %566 = vmatpush2.msra.mxu0 0.0
    %567 = vmatprep.subr.mxu0 0.0
    %568 = vmatpush2.msra.mxu0 0.0
    %569 = vmatprep.subr.mxu0 0.0
    %570 = vmatpush2.msra.mxu0 0.0
    %571 = vmatprep.subr.mxu0 0.0
    %572 = vmatpush2.msra.mxu0 0.0
    %573 = vmatprep.subr.mxu0 0.0
    %574 = vmatpush2.msra.mxu0 0.0
    %575 = vmatprep.subr.mxu0 0.0
    %576 = vmatpush2.msra.mxu0 0.0
    %577 = vmatprep.subr.mxu0 0.0
    %578 = vmatpush2.msra.mxu0 0.0
    %579 = vmatprep.subr.mxu0 0.0
    %580 = vmatpush2.msra.mxu0 0.0
    %581 = vmatprep.subr.mxu0 0.0
    %582 = vmatpush2.msra.mxu0 0.0
    %583 = vmatprep.subr.mxu0 0.0
    %584 = vmatpush2.msra.mxu0 0.0
    %585 = vmatprep.subr.mxu0 0.0
    %586 = vmatpush2.msra.mxu0 0.0
    %587 = vmatprep.subr.mxu0 0.0
    %588 = vmatpush2.msra.mxu0 0.0
    %589 = vmatprep.subr.mxu0 0.0
    %590 = vmatpush2.msra.mxu0 0.0
    %591 = vmatprep.subr.mxu0 0.0
    %592 = vmatpush2.msra.mxu0 0.0
    %593 = vmatprep.subr.mxu0 0.0
    %594 = vmatpush2.msra.mxu0 0.0
    %595 = vmatprep.mubr.f32.mxu0 0.0
    %596 = vmatmul.mubr.f32.gmra.mxu0 %v482
    %v597 = vpop.f32.mrf.mxu0
    %v598 = vadd.f32 0.0, %v597
    %v599 = vpop.f32.mrf.mxu0
    %600 = vmatprep.mubr.f32.mxu0 0.0
    %601 = vmatmul.mubr.f32.gmra.mxu0 %v483
    %v602 = vpop.f32.mrf.mxu0
    %v603 = vadd.f32 0.0, %v602
    %v604 = vpop.f32.mrf.mxu0
    %605 = vmatprep.mubr.f32.mxu0 0.0
    %606 = vmatmul.mubr.f32.gmra.mxu0 %v484
    %v607 = vpop.f32.mrf.mxu0
    %v608 = vadd.f32 0.0, %v607
    %v609 = vpop.f32.mrf.mxu0
    %610 = vmatprep.mubr.f32.mxu0 0.0
    %611 = vmatmul.mubr.f32.gmra.mxu0 %v485
    %v612 = vpop.f32.mrf.mxu0
    %v613 = vadd.f32 0.0, %v612
    %v614 = vpop.f32.mrf.mxu0
    %615 = vmatprep.mubr.f32.mxu0 0.0
    %616 = vmatmul.mubr.f32.gmra.mxu0 %v486
    %v617 = vpop.f32.mrf.mxu0
    %v618 = vadd.f32 0.0, %v617
    %v619 = vpop.f32.mrf.mxu0
    %620 = vmatprep.mubr.f32.mxu0 0.0
    %621 = vmatmul.mubr.f32.gmra.mxu0 %v487
    %v622 = vpop.f32.mrf.mxu0
    %v623 = vadd.f32 0.0, %v622
    %v624 = vpop.f32.mrf.mxu0
    %625 = vmatprep.mubr.f32.mxu0 0.0
    %626 = vmatmul.mubr.f32.gmra.mxu0 %v488
    %v627 = vpop.f32.mrf.mxu0
    %v628 = vadd.f32 0.0, %v627
    %v629 = vpop.f32.mrf.mxu0
    %630 = vmatprep.mubr.f32.mxu0 0.0
    %631 = vmatmul.mubr.f32.gmra.mxu0 %v489
    %v632 = vpop.f32.mrf.mxu0
    %v633 = vadd.f32 0.0, %v632
    %v634 = vpop.f32.mrf.mxu0
    %635 = vmatprep.mubr.f32.mxu0 0.0
    %636 = vmatmul.mubr.f32.gmra.mxu0 %v490
    %v637 = vpop.f32.mrf.mxu0
    %v638 = vadd.f32 0.0, %v637
    %v639 = vpop.f32.mrf.mxu0
    %640 = vmatprep.mubr.f32.mxu0 0.0
    %641 = vmatmul.mubr.f32.gmra.mxu0 %v491
    %v642 = vpop.f32.mrf.mxu0
    %v643 = vadd.f32 0.0, %v642
    %v644 = vpop.f32.mrf.mxu0
    %645 = vmatprep.mubr.f32.mxu0 0.0
    %646 = vmatmul.mubr.f32.gmra.mxu0 %v492
    %v647 = vpop.f32.mrf.mxu0
    %v648 = vadd.f32 0.0, %v647
    %v649 = vpop.f32.mrf.mxu0
    %650 = vmatprep.mubr.f32.mxu0 0.0
    %651 = vmatmul.mubr.f32.gmra.mxu0 %v493
    %v652 = vpop.f32.mrf.mxu0
    %v653 = vadd.f32 0.0, %v652
    %v654 = vpop.f32.mrf.mxu0
    %655 = vmatprep.mubr.f32.mxu0 0.0
    %656 = vmatmul.mubr.f32.gmra.mxu0 %v494
    %v657 = vpop.f32.mrf.mxu0
    %v658 = vadd.f32 0.0, %v657
    %v659 = vpop.f32.mrf.mxu0
    %660 = vmatprep.mubr.f32.mxu0 0.0
    %661 = vmatmul.mubr.f32.gmra.mxu0 %v495
    %v662 = vpop.f32.mrf.mxu0
    %v663 = vadd.f32 0.0, %v662
    %v664 = vpop.f32.mrf.mxu0
    %665 = vmatprep.mubr.f32.mxu0 0.0
    %666 = vmatmul.mubr.f32.gmra.mxu0 %v496
    %v667 = vpop.f32.mrf.mxu0
    %v668 = vadd.f32 0.0, %v667
    %v669 = vpop.f32.mrf.mxu0
    %670 = vmatprep.mubr.f32.mxu0 0.0
    %671 = vmatmul.mubr.f32.gmra.mxu0 %v497
    %v672 = vpop.f32.mrf.mxu0
    %v673 = vadd.f32 0.0, %v672
    %v674 = vpop.f32.mrf.mxu0
    %675 = vdwg.mxu0
    %v676 = vadd.f32 %v515, %v598
    %v677 = vadd.f32 %v516, %v603
    %v678 = vadd.f32 %v517, %v608
    %v679 = vadd.f32 %v518, %v613
    %v680 = vadd.f32 %v519, %v618
    %v681 = vadd.f32 %v520, %v623
    %v682 = vadd.f32 %v521, %v628
    %v683 = vadd.f32 %v522, %v633
    %v684 = vadd.f32 %v523, %v638
    %v685 = vadd.f32 %v524, %v643
    %v686 = vadd.f32 %v525, %v648
    %v687 = vadd.f32 %v526, %v653
    %v688 = vadd.f32 %v527, %v658
    %v689 = vadd.f32 %v528, %v663
    %v690 = vadd.f32 %v529, %v668
    %v691 = vadd.f32 %v530, %v673
    %692 = vst [vmem:[#allocation3] sm:$0xff] %v676
    %693 = vst [vmem:[#allocation3 + $0x8] sm:$0xff] %v677
    %694 = vst [vmem:[#allocation3 + $0x10] sm:$0xff] %v678
    %695 = vst [vmem:[#allocation3 + $0x18] sm:$0xff] %v679
    %696 = vst [vmem:[#allocation3 + $0x20] sm:$0xff] %v680
    %697 = vst [vmem:[#allocation3 + $0x28] sm:$0xff] %v681
    %698 = vst [vmem:[#allocation3 + $0x30] sm:$0xff] %v682
    %699 = vst [vmem:[#allocation3 + $0x38] sm:$0xff] %v683
    %700 = vst [vmem:[#allocation3 + $0x40] sm:$0xff] %v684
    %701 = vst [vmem:[#allocation3 + $0x48] sm:$0xff] %v685
    %702 = vst [vmem:[#allocation3 + $0x50] sm:$0xff] %v686
    %703 = vst [vmem:[#allocation3 + $0x58] sm:$0xff] %v687
    %704 = vst [vmem:[#allocation3 + $0x60] sm:$0xff] %v688
    %705 = vst [vmem:[#allocation3 + $0x68] sm:$0xff] %v689
    %706 = vst [vmem:[#allocation3 + $0x70] sm:$0xff] %v690
    %707 = vst [vmem:[#allocation3 + $0x78] sm:$0xff] %v691
    %s708 = scalar_lea.vmem [#allocation7], 128
    %v709 = vld [vmem:[%s708] sm:$0xff]
    %v710 = vld [vmem:[%s708 + $0x8] sm:$0xff]
    %v711 = vld [vmem:[%s708 + $0x10] sm:$0xff]
    %v712 = vld [vmem:[%s708 + $0x18] sm:$0xff]
    %v713 = vld [vmem:[%s708 + $0x20] sm:$0xff]
    %v714 = vld [vmem:[%s708 + $0x28] sm:$0xff]
    %v715 = vld [vmem:[%s708 + $0x30] sm:$0xff]
    %v716 = vld [vmem:[%s708 + $0x38] sm:$0xff]
    %v717 = vld [vmem:[%s708 + $0x40] sm:$0xff]
    %v718 = vld [vmem:[%s708 + $0x48] sm:$0xff]
    %v719 = vld [vmem:[%s708 + $0x50] sm:$0xff]
    %v720 = vld [vmem:[%s708 + $0x58] sm:$0xff]
    %v721 = vld [vmem:[%s708 + $0x60] sm:$0xff]
    %v722 = vld [vmem:[%s708 + $0x68] sm:$0xff]
    %v723 = vld [vmem:[%s708 + $0x70] sm:$0xff]
    %v724 = vld [vmem:[%s708 + $0x78] sm:$0xff]
    %s725 = sadd.s32 %s59, 128
    %s726 = scalar_lea.vmem [#allocation2], %s725
    %v727 = vld [vmem:[%s726] sm:$0xff]
    %v728 = vld [vmem:[%s726 + $0x8] sm:$0xff]
    %v729 = vld [vmem:[%s726 + $0x10] sm:$0xff]
    %v730 = vld [vmem:[%s726 + $0x18] sm:$0xff]
    %v731 = vld [vmem:[%s726 + $0x20] sm:$0xff]
    %v732 = vld [vmem:[%s726 + $0x28] sm:$0xff]
    %v733 = vld [vmem:[%s726 + $0x30] sm:$0xff]
    %v734 = vld [vmem:[%s726 + $0x38] sm:$0xff]
    %v735 = vld [vmem:[%s726 + $0x40] sm:$0xff]
    %v736 = vld [vmem:[%s726 + $0x48] sm:$0xff]
    %v737 = vld [vmem:[%s726 + $0x50] sm:$0xff]
    %v738 = vld [vmem:[%s726 + $0x58] sm:$0xff]
    %v739 = vld [vmem:[%s726 + $0x60] sm:$0xff]
    %v740 = vld [vmem:[%s726 + $0x68] sm:$0xff]
    %v741 = vld [vmem:[%s726 + $0x70] sm:$0xff]
    %v742 = vld [vmem:[%s726 + $0x78] sm:$0xff]
    %s743 = scalar_lea.vmem [#allocation3], 128
    %v744 = vld [vmem:[%s743] sm:$0xff]
    %v745 = vld [vmem:[%s743 + $0x8] sm:$0xff]
    %v746 = vld [vmem:[%s743 + $0x10] sm:$0xff]
    %v747 = vld [vmem:[%s743 + $0x18] sm:$0xff]
    %v748 = vld [vmem:[%s743 + $0x20] sm:$0xff]
    %v749 = vld [vmem:[%s743 + $0x28] sm:$0xff]
    %v750 = vld [vmem:[%s743 + $0x30] sm:$0xff]
    %v751 = vld [vmem:[%s743 + $0x38] sm:$0xff]
    %v752 = vld [vmem:[%s743 + $0x40] sm:$0xff]
    %v753 = vld [vmem:[%s743 + $0x48] sm:$0xff]
    %v754 = vld [vmem:[%s743 + $0x50] sm:$0xff]
    %v755 = vld [vmem:[%s743 + $0x58] sm:$0xff]
    %v756 = vld [vmem:[%s743 + $0x60] sm:$0xff]
    %v757 = vld [vmem:[%s743 + $0x68] sm:$0xff]
    %v758 = vld [vmem:[%s743 + $0x70] sm:$0xff]
    %v759 = vld [vmem:[%s743 + $0x78] sm:$0xff]
    %760 = vmatprep.subr.mxu0 0.0
    %761 = vmatpush1.msra.mxu0 %v742
    %762 = vmatprep.subr.mxu0 0.0
    %763 = vmatpush1.msra.mxu0 %v741
    %764 = vmatprep.subr.mxu0 0.0
    %765 = vmatpush1.msra.mxu0 %v740
    %766 = vmatprep.subr.mxu0 0.0
    %767 = vmatpush1.msra.mxu0 %v739
    %768 = vmatprep.subr.mxu0 0.0
    %769 = vmatpush1.msra.mxu0 %v738
    %770 = vmatprep.subr.mxu0 0.0
    %771 = vmatpush1.msra.mxu0 %v737
    %772 = vmatprep.subr.mxu0 0.0
    %773 = vmatpush1.msra.mxu0 %v736
    %774 = vmatprep.subr.mxu0 0.0
    %775 = vmatpush1.msra.mxu0 %v735
    %776 = vmatprep.subr.mxu0 0.0
    %777 = vmatpush1.msra.mxu0 %v734
    %778 = vmatprep.subr.mxu0 0.0
    %779 = vmatpush1.msra.mxu0 %v733
    %780 = vmatprep.subr.mxu0 0.0
    %781 = vmatpush1.msra.mxu0 %v732
    %782 = vmatprep.subr.mxu0 0.0
    %783 = vmatpush1.msra.mxu0 %v731
    %784 = vmatprep.subr.mxu0 0.0
    %785 = vmatpush1.msra.mxu0 %v730
    %786 = vmatprep.subr.mxu0 0.0
    %787 = vmatpush1.msra.mxu0 %v729
    %788 = vmatprep.subr.mxu0 0.0
    %789 = vmatpush1.msra.mxu0 %v728
    %790 = vmatprep.subr.mxu0 0.0
    %791 = vmatpush1.msra.mxu0 %v727
    %792 = vmatprep.subr.mxu0 0.0
    %793 = vmatpush2.msra.mxu0 0.0
    %794 = vmatprep.subr.mxu0 0.0
    %795 = vmatpush2.msra.mxu0 0.0
    %796 = vmatprep.subr.mxu0 0.0
    %797 = vmatpush2.msra.mxu0 0.0
    %798 = vmatprep.subr.mxu0 0.0
    %799 = vmatpush2.msra.mxu0 0.0
    %800 = vmatprep.subr.mxu0 0.0
    %801 = vmatpush2.msra.mxu0 0.0
    %802 = vmatprep.subr.mxu0 0.0
    %803 = vmatpush2.msra.mxu0 0.0
    %804 = vmatprep.subr.mxu0 0.0
    %805 = vmatpush2.msra.mxu0 0.0
    %806 = vmatprep.subr.mxu0 0.0
    %807 = vmatpush2.msra.mxu0 0.0
    %808 = vmatprep.subr.mxu0 0.0
    %809 = vmatpush2.msra.mxu0 0.0
    %810 = vmatprep.subr.mxu0 0.0
    %811 = vmatpush2.msra.mxu0 0.0
    %812 = vmatprep.subr.mxu0 0.0
    %813 = vmatpush2.msra.mxu0 0.0
    %814 = vmatprep.subr.mxu0 0.0
    %815 = vmatpush2.msra.mxu0 0.0
    %816 = vmatprep.subr.mxu0 0.0
    %817 = vmatpush2.msra.mxu0 0.0
    %818 = vmatprep.subr.mxu0 0.0
    %819 = vmatpush2.msra.mxu0 0.0
    %820 = vmatprep.subr.mxu0 0.0
    %821 = vmatpush2.msra.mxu0 0.0
    %822 = vmatprep.subr.mxu0 0.0
    %823 = vmatpush2.msra.mxu0 0.0
    %824 = vmatprep.mubr.f32.mxu0 0.0
    %825 = vmatmul.mubr.f32.gmra.mxu0 %v709
    %v826 = vpop.f32.mrf.mxu0
    %v827 = vadd.f32 0.0, %v826
    %v828 = vpop.f32.mrf.mxu0
    %829 = vmatprep.mubr.f32.mxu0 0.0
    %830 = vmatmul.mubr.f32.gmra.mxu0 %v710
    %v831 = vpop.f32.mrf.mxu0
    %v832 = vadd.f32 0.0, %v831
    %v833 = vpop.f32.mrf.mxu0
    %834 = vmatprep.mubr.f32.mxu0 0.0
    %835 = vmatmul.mubr.f32.gmra.mxu0 %v711
    %v836 = vpop.f32.mrf.mxu0
    %v837 = vadd.f32 0.0, %v836
    %v838 = vpop.f32.mrf.mxu0
    %839 = vmatprep.mubr.f32.mxu0 0.0
    %840 = vmatmul.mubr.f32.gmra.mxu0 %v712
    %v841 = vpop.f32.mrf.mxu0
    %v842 = vadd.f32 0.0, %v841
    %v843 = vpop.f32.mrf.mxu0
    %844 = vmatprep.mubr.f32.mxu0 0.0
    %845 = vmatmul.mubr.f32.gmra.mxu0 %v713
    %v846 = vpop.f32.mrf.mxu0
    %v847 = vadd.f32 0.0, %v846
    %v848 = vpop.f32.mrf.mxu0
    %849 = vmatprep.mubr.f32.mxu0 0.0
    %850 = vmatmul.mubr.f32.gmra.mxu0 %v714
    %v851 = vpop.f32.mrf.mxu0
    %v852 = vadd.f32 0.0, %v851
    %v853 = vpop.f32.mrf.mxu0
    %854 = vmatprep.mubr.f32.mxu0 0.0
    %855 = vmatmul.mubr.f32.gmra.mxu0 %v715
    %v856 = vpop.f32.mrf.mxu0
    %v857 = vadd.f32 0.0, %v856
    %v858 = vpop.f32.mrf.mxu0
    %859 = vmatprep.mubr.f32.mxu0 0.0
    %860 = vmatmul.mubr.f32.gmra.mxu0 %v716
    %v861 = vpop.f32.mrf.mxu0
    %v862 = vadd.f32 0.0, %v861
    %v863 = vpop.f32.mrf.mxu0
    %864 = vmatprep.mubr.f32.mxu0 0.0
    %865 = vmatmul.mubr.f32.gmra.mxu0 %v717
    %v866 = vpop.f32.mrf.mxu0
    %v867 = vadd.f32 0.0, %v866
    %v868 = vpop.f32.mrf.mxu0
    %869 = vmatprep.mubr.f32.mxu0 0.0
    %870 = vmatmul.mubr.f32.gmra.mxu0 %v718
    %v871 = vpop.f32.mrf.mxu0
    %v872 = vadd.f32 0.0, %v871
    %v873 = vpop.f32.mrf.mxu0
    %874 = vmatprep.mubr.f32.mxu0 0.0
    %875 = vmatmul.mubr.f32.gmra.mxu0 %v719
    %v876 = vpop.f32.mrf.mxu0
    %v877 = vadd.f32 0.0, %v876
    %v878 = vpop.f32.mrf.mxu0
    %879 = vmatprep.mubr.f32.mxu0 0.0
    %880 = vmatmul.mubr.f32.gmra.mxu0 %v720
    %v881 = vpop.f32.mrf.mxu0
    %v882 = vadd.f32 0.0, %v881
    %v883 = vpop.f32.mrf.mxu0
    %884 = vmatprep.mubr.f32.mxu0 0.0
    %885 = vmatmul.mubr.f32.gmra.mxu0 %v721
    %v886 = vpop.f32.mrf.mxu0
    %v887 = vadd.f32 0.0, %v886
    %v888 = vpop.f32.mrf.mxu0
    %889 = vmatprep.mubr.f32.mxu0 0.0
    %890 = vmatmul.mubr.f32.gmra.mxu0 %v722
    %v891 = vpop.f32.mrf.mxu0
    %v892 = vadd.f32 0.0, %v891
    %v893 = vpop.f32.mrf.mxu0
    %894 = vmatprep.mubr.f32.mxu0 0.0
    %895 = vmatmul.mubr.f32.gmra.mxu0 %v723
    %v896 = vpop.f32.mrf.mxu0
    %v897 = vadd.f32 0.0, %v896
    %v898 = vpop.f32.mrf.mxu0
    %899 = vmatprep.mubr.f32.mxu0 0.0
    %900 = vmatmul.mubr.f32.gmra.mxu0 %v724
    %v901 = vpop.f32.mrf.mxu0
    %v902 = vadd.f32 0.0, %v901
    %v903 = vpop.f32.mrf.mxu0
    %904 = vdwg.mxu0
    %v905 = vadd.f32 %v744, %v827
    %v906 = vadd.f32 %v745, %v832
    %v907 = vadd.f32 %v746, %v837
    %v908 = vadd.f32 %v747, %v842
    %v909 = vadd.f32 %v748, %v847
    %v910 = vadd.f32 %v749, %v852
    %v911 = vadd.f32 %v750, %v857
    %v912 = vadd.f32 %v751, %v862
    %v913 = vadd.f32 %v752, %v867
    %v914 = vadd.f32 %v753, %v872
    %v915 = vadd.f32 %v754, %v877
    %v916 = vadd.f32 %v755, %v882
    %v917 = vadd.f32 %v756, %v887
    %v918 = vadd.f32 %v757, %v892
    %v919 = vadd.f32 %v758, %v897
    %v920 = vadd.f32 %v759, %v902
    %921 = vst [vmem:[%s743] sm:$0xff] %v905
    %922 = vst [vmem:[%s743 + $0x8] sm:$0xff] %v906
    %923 = vst [vmem:[%s743 + $0x10] sm:$0xff] %v907
    %924 = vst [vmem:[%s743 + $0x18] sm:$0xff] %v908
    %925 = vst [vmem:[%s743 + $0x20] sm:$0xff] %v909
    %926 = vst [vmem:[%s743 + $0x28] sm:$0xff] %v910
    %927 = vst [vmem:[%s743 + $0x30] sm:$0xff] %v911
    %928 = vst [vmem:[%s743 + $0x38] sm:$0xff] %v912
    %929 = vst [vmem:[%s743 + $0x40] sm:$0xff] %v913
    %930 = vst [vmem:[%s743 + $0x48] sm:$0xff] %v914
    %931 = vst [vmem:[%s743 + $0x50] sm:$0xff] %v915
    %932 = vst [vmem:[%s743 + $0x58] sm:$0xff] %v916
    %933 = vst [vmem:[%s743 + $0x60] sm:$0xff] %v917
    %934 = vst [vmem:[%s743 + $0x68] sm:$0xff] %v918
    %935 = vst [vmem:[%s743 + $0x70] sm:$0xff] %v919
    %936 = vst [vmem:[%s743 + $0x78] sm:$0xff] %v920
    // Predicated region
    $region38: #{tpu_custom_call.1} parent=1 // pred_check
      %p937 = pneg %p446
    $region39: #{tpu_custom_call.1} parent=1 // pred_check_branch
      %939 = sbr.rel (%p937) target = $region41
    $region40: #{tpu_custom_call.1} parent=1 // pred_region
      %v940 = vld [vmem:[#allocation3] sm:$0xff]
      %v941 = vld [vmem:[#allocation3 + $0x8] sm:$0xff]
      %v942 = vld [vmem:[#allocation3 + $0x10] sm:$0xff]
      %v943 = vld [vmem:[#allocation3 + $0x18] sm:$0xff]
      %v944 = vld [vmem:[#allocation3 + $0x20] sm:$0xff]
      %v945 = vld [vmem:[#allocation3 + $0x28] sm:$0xff]
      %v946 = vld [vmem:[#allocation3 + $0x30] sm:$0xff]
      %v947 = vld [vmem:[#allocation3 + $0x38] sm:$0xff]
      %v948 = vld [vmem:[#allocation3 + $0x40] sm:$0xff]
      %v949 = vld [vmem:[#allocation3 + $0x48] sm:$0xff]
      %v950 = vld [vmem:[#allocation3 + $0x50] sm:$0xff]
      %v951 = vld [vmem:[#allocation3 + $0x58] sm:$0xff]
      %v952 = vld [vmem:[#allocation3 + $0x60] sm:$0xff]
      %v953 = vld [vmem:[#allocation3 + $0x68] sm:$0xff]
      %v954 = vld [vmem:[#allocation3 + $0x70] sm:$0xff]
      %v955 = vld [vmem:[#allocation3 + $0x78] sm:$0xff]
      %v956 = vld [vmem:[#allocation3 + $0x80] sm:$0xff]
      %v957 = vld [vmem:[#allocation3 + $0x88] sm:$0xff]
      %v958 = vld [vmem:[#allocation3 + $0x90] sm:$0xff]
      %v959 = vld [vmem:[#allocation3 + $0x98] sm:$0xff]
      %v960 = vld [vmem:[#allocation3 + $0xa0] sm:$0xff]
      %v961 = vld [vmem:[#allocation3 + $0xa8] sm:$0xff]
      %v962 = vld [vmem:[#allocation3 + $0xb0] sm:$0xff]
      %v963 = vld [vmem:[#allocation3 + $0xb8] sm:$0xff]
      %v964 = vld [vmem:[#allocation3 + $0xc0] sm:$0xff]
      %v965 = vld [vmem:[#allocation3 + $0xc8] sm:$0xff]
      %v966 = vld [vmem:[#allocation3 + $0xd0] sm:$0xff]
      %v967 = vld [vmem:[#allocation3 + $0xd8] sm:$0xff]
      %v968 = vld [vmem:[#allocation3 + $0xe0] sm:$0xff]
      %v969 = vld [vmem:[#allocation3 + $0xe8] sm:$0xff]
      %v970 = vld [vmem:[#allocation3 + $0xf0] sm:$0xff]
      %v971 = vld [vmem:[#allocation3 + $0xf8] sm:$0xff]
      %972 = vst [vmem:[#allocation10] sm:$0xff] %v940
      %973 = vst [vmem:[#allocation10 + $0x8] sm:$0xff] %v941
      %974 = vst [vmem:[#allocation10 + $0x10] sm:$0xff] %v942
      %975 = vst [vmem:[#allocation10 + $0x18] sm:$0xff] %v943
      %976 = vst [vmem:[#allocation10 + $0x20] sm:$0xff] %v944
      %977 = vst [vmem:[#allocation10 + $0x28] sm:$0xff] %v945
      %978 = vst [vmem:[#allocation10 + $0x30] sm:$0xff] %v946
      %979 = vst [vmem:[#allocation10 + $0x38] sm:$0xff] %v947
      %980 = vst [vmem:[#allocation10 + $0x40] sm:$0xff] %v948
      %981 = vst [vmem:[#allocation10 + $0x48] sm:$0xff] %v949
      %982 = vst [vmem:[#allocation10 + $0x50] sm:$0xff] %v950
      %983 = vst [vmem:[#allocation10 + $0x58] sm:$0xff] %v951
      %984 = vst [vmem:[#allocation10 + $0x60] sm:$0xff] %v952
      %985 = vst [vmem:[#allocation10 + $0x68] sm:$0xff] %v953
      %986 = vst [vmem:[#allocation10 + $0x70] sm:$0xff] %v954
      %987 = vst [vmem:[#allocation10 + $0x78] sm:$0xff] %v955
      %988 = vst [vmem:[#allocation10 + $0x80] sm:$0xff] %v956
      %989 = vst [vmem:[#allocation10 + $0x88] sm:$0xff] %v957
      %990 = vst [vmem:[#allocation10 + $0x90] sm:$0xff] %v958
      %991 = vst [vmem:[#allocation10 + $0x98] sm:$0xff] %v959
      %992 = vst [vmem:[#allocation10 + $0xa0] sm:$0xff] %v960
      %993 = vst [vmem:[#allocation10 + $0xa8] sm:$0xff] %v961
      %994 = vst [vmem:[#allocation10 + $0xb0] sm:$0xff] %v962
      %995 = vst [vmem:[#allocation10 + $0xb8] sm:$0xff] %v963
      %996 = vst [vmem:[#allocation10 + $0xc0] sm:$0xff] %v964
      %997 = vst [vmem:[#allocation10 + $0xc8] sm:$0xff] %v965
      %998 = vst [vmem:[#allocation10 + $0xd0] sm:$0xff] %v966
      %999 = vst [vmem:[#allocation10 + $0xd8] sm:$0xff] %v967
      %1000 = vst [vmem:[#allocation10 + $0xe0] sm:$0xff] %v968
      %1001 = vst [vmem:[#allocation10 + $0xe8] sm:$0xff] %v969
      %1002 = vst [vmem:[#allocation10 + $0xf0] sm:$0xff] %v970
      %1003 = vst [vmem:[#allocation10 + $0xf8] sm:$0xff] %v971
    $region41: #{tpu_custom_call.1} parent=1 // pred_fallthru
      _
    // Predicated region
    $region42: #{tpu_custom_call.1} parent=1 // pred_check
      _
    $region43: #{tpu_custom_call.1} parent=1 // pred_check_branch
      %1005 = sbr.rel (0) target = $region45
    $region44: #{tpu_custom_call.1} parent=1 // pred_region
      %s1007 = ssub.s32 4096, 4096
      %1008 = vsyncadd [#allocation6], %s1007
      %s1009 = sshll.u32 [#allocation10], 4
      %s1010 = int_to_ptr.vmem [resolvable:$true] %s1009
      %1015 = dma.vmem_to_hbm [thread:$0]  %s1010, 4096, %s4, [#allocation6], 128, 128, 8
    $region45: #{tpu_custom_call.1} parent=1 // pred_fallthru
      _
    // Predicated region
    $region46: #{tpu_custom_call.1} parent=1 // pred_check
      _
    $region47: #{tpu_custom_call.1} parent=1 // pred_check_branch
      %1017 = sbr.rel (0) target = $region49
    $region48: #{tpu_custom_call.1} parent=1 // pred_region
      %1018 = dma.done [#allocation6], 4096
    $region49: #{tpu_custom_call.1} parent=1 // pred_fallthru
      _
    %1019 = vsyncpa [#allocation5], 1
    %1020 = vsyncpa [#allocation8], 1
    %1021 = vsyncpa [#allocation6], 1

</llo_original>
